<compile_context>
chip_gen: v6e
topology: v6e:2x2x1
jax: 0.10.0
libtpu: 0.0.40
codegen_flags: <defaults>
</compile_context>

<pallas_src>
import jax
import jax.numpy as jnp
from jax.experimental import pallas as pl
from jax.experimental.pallas import tpu as pltpu


def _round_up(n, m):
    return ((n + m - 1) // m) * m


def _make_kernel(in_features, hidden, out_features, offs):
    o_bias, o_w1t, o_w2t, o_w3t = offs

    def kernel(xt_ref, w_ref, q_ref, a_ref):
        xt = xt_ref[...]                                         # (in, tb)

        # Layer 1: h1 = tanh(w1^T x + b1)  -> (H, tb), lane-dense
        w1t = w_ref[o_w1t:o_w1t + hidden, :in_features]          # (H, in)
        b1 = w_ref[o_bias:o_bias + hidden, 0:1]                  # (H, 1)
        h1 = jnp.tanh(jnp.dot(w1t, xt, preferred_element_type=jnp.float32) + b1)

        # Layer 2: h2 = tanh(w2^T h1 + b2) -> (H, tb)
        w2t = w_ref[o_w2t:o_w2t + hidden, :hidden]               # (H, H)
        b2 = w_ref[o_bias:o_bias + hidden, 1:2]                  # (H, 1)
        h2 = jnp.tanh(jnp.dot(w2t, h1, preferred_element_type=jnp.float32) + b2)

        # Layer 3: q = w3^T h2 + b3 -> (out, tb)
        w3t = w_ref[o_w3t:o_w3t + out_features, :hidden]         # (out, H)
        b3 = w_ref[o_bias:o_bias + out_features, 2:3]            # (out, 1)
        q = jnp.dot(w3t, h2, preferred_element_type=jnp.float32) + b3

        q_ref[...] = q.astype(q_ref.dtype)                       # lane-dense store

        # Fused argmax over the out_features sublane rows (torch get_action).
        # Unrolled compare/select chain; strict '>' keeps first-max tie-break.
        best_q = q[0:1, :]                                       # (1, tb)
        best_i = jnp.zeros(best_q.shape, jnp.int32)
        for r in range(1, out_features):
            qr = q[r:r + 1, :]
            take = qr > best_q
            best_q = jnp.where(take, qr, best_q)
            best_i = jnp.where(take, jnp.int32(r), best_i)
        a_ref[...] = best_i                                      # (1, tb) lane-dense

    return kernel


def pack_params(params, in_features, hidden, out_features):
    """Pack all six parameter tensors into one zero-padded (rows, hidden) f32 slab.

    Feature-major layout (all block offsets sublane-aligned to 8):
      rows [o_bias : o_bias+H]  : biases as columns  (col0=b1, col1=b2, col2=b3)
      rows [o_w1t  : o_w1t +H]  : w1^T  (H x in, cols >= in zero)
      rows [o_w2t  : o_w2t +H]  : w2^T  (H x H)
      rows [o_w3t  : o_w3t+out] : w3^T  (out x H)
    """
    assert hidden >= in_features, "slab width (hidden) must hold w1^T columns"
    assert hidden >= out_features and hidden >= 3

    o_bias = 0
    o_w1t = o_bias + _round_up(hidden, 8)
    o_w2t = o_w1t + _round_up(hidden, 8)
    o_w3t = o_w2t + _round_up(hidden, 8)
    rows = o_w3t + _round_up(out_features, 8)

    slab = jnp.zeros((rows, hidden), jnp.float32)
    slab = slab.at[o_bias:o_bias + hidden, 0].set(params["b1"].reshape(-1))
    slab = slab.at[o_bias:o_bias + hidden, 1].set(params["b2"].reshape(-1))
    slab = slab.at[o_bias:o_bias + out_features, 2].set(params["b3"].reshape(-1))
    slab = slab.at[o_w1t:o_w1t + hidden, :in_features].set(params["w1"].T)
    slab = slab.at[o_w2t:o_w2t + hidden, :hidden].set(params["w2"].T)
    slab = slab.at[o_w3t:o_w3t + out_features, :hidden].set(params["w3"].T)
    return slab, (o_bias, o_w1t, o_w2t, o_w3t)


def dqn_forward(x, slab, offs, *, in_features, hidden, out_features, tile_b=8192):
    """Returns (q_values (B, out), actions (B,) int32)."""
    B = x.shape[0]
    rows, cols = slab.shape
    assert cols == hidden and x.shape[1] == in_features

    # Feature-major: batch sits on the 128-lane axis inside the kernel.
    # Transposes here are wrapper-side layout plumbing only.
    xt = x.T                                                     # (in, B)

    if B <= tile_b:
        # Typical DQN batch: one full-extent block -- no grid steps, no pad/slice.
        tb, grid = B, (1,)
    else:
        # Huge batch: 1-D parallel batch grid with lane-dense tiles; ragged last
        # block's out-of-bounds lanes are dropped on write by Pallas.
        tb, grid = tile_b, (pl.cdiv(B, tile_b),)

    kernel = _make_kernel(in_features, hidden, out_features, offs)

    cost = pl.CostEstimate(
        flops=2 * B * (in_features * hidden + hidden * hidden + hidden * out_features),
        transcendentals=2 * B * hidden,
        bytes_accessed=4 * (B * (in_features + out_features + 1) + rows * cols),
    )

    q_t, act = pl.pallas_call(
        kernel,
        out_shape=(
            jax.ShapeDtypeStruct((out_features, B), jnp.float32),
            jax.ShapeDtypeStruct((1, B), jnp.int32),
        ),
        grid_spec=pltpu.PrefetchScalarGridSpec(
            num_scalar_prefetch=0,
            grid=grid,
            in_specs=[
                pl.BlockSpec((in_features, tb), lambda i: (0, i)),   # x^T tile
                pl.BlockSpec((rows, cols), lambda i: (0, 0)),        # packed params
            ],
            out_specs=[
                pl.BlockSpec((out_features, tb), lambda i: (0, i)),  # q (feature-major)
                pl.BlockSpec((1, tb), lambda i: (0, i)),             # action row
            ],
        ),
        compiler_params=pltpu.CompilerParams(
            dimension_semantics=("parallel",)
        ),
        cost_estimate=cost,
    )(xt, slab)

    return q_t.T, act[0]


def init_params(key, in_features, hidden, out_features):
    """Deterministic init mimicking torch.nn.Linear default (uniform +-1/sqrt(fan_in))."""
    ks = jax.random.split(key, 6)

    def linear(kw, kb, fan_in, fan_out):
        bound = 1.0 / jnp.sqrt(float(fan_in))
        w = jax.random.uniform(kw, (fan_in, fan_out), jnp.float32, -bound, bound)
        b = jax.random.uniform(kb, (fan_out,), jnp.float32, -bound, bound)
        return w, b

    w1, b1 = linear(ks[0], ks[1], in_features, hidden)
    w2, b2 = linear(ks[2], ks[3], hidden, hidden)
    w3, b3 = linear(ks[4], ks[5], hidden, out_features)
    return {"w1": w1, "b1": b1, "w2": w2, "b2": b2, "w3": w3, "b3": b3}


def dqn_reference(x, p):
    h1 = jnp.tanh(x @ p["w1"] + p["b1"])
    h2 = jnp.tanh(h1 @ p["w2"] + p["b2"])
    return h2 @ p["w3"] + p["b3"]


if __name__ == "__main__":
    # LunarLanderContinuous observation space shape is (8,) -> in_features = 8.
    IN_FEATURES = 8
    HIDDEN = 32
    OUT_FEATURES = 4   # discretized-action Q-head
    BATCH = 2

    key = jax.random.PRNGKey(0)
    k_params, k_x, k_xl, k_xg = jax.random.split(key, 4)

    params = init_params(k_params, IN_FEATURES, HIDDEN, OUT_FEATURES)
    slab, offs = pack_params(params, IN_FEATURES, HIDDEN, OUT_FEATURES)

    # 1) Tiny inference batch (get_action path): single full-extent block, fused argmax.
    x = jax.random.normal(k_x, (BATCH, IN_FEATURES), dtype=jnp.float32)
    q, act = dqn_forward(x, slab, offs, in_features=IN_FEATURES,
                         hidden=HIDDEN, out_features=OUT_FEATURES)
    q = jax.block_until_ready(q)
    q_ref = dqn_reference(x, params)
    assert q.shape == (BATCH, OUT_FEATURES)
    assert jnp.allclose(q, q_ref, atol=1e-4, rtol=1e-4), "q mismatch vs reference"
    assert jnp.array_equal(act, jnp.argmax(q, axis=1).astype(jnp.int32)), "action mismatch"
    action = int(act[0])   # get_action equivalent, computed inside the kernel
    assert 0 <= action < OUT_FEATURES

    # 2) Typical training batch: still a single full-extent block (no pad / slice ops).
    xl = jax.random.normal(k_xl, (1000, IN_FEATURES), dtype=jnp.float32)
    ql, actl = dqn_forward(xl, slab, offs, in_features=IN_FEATURES,
                           hidden=HIDDEN, out_features=OUT_FEATURES)
    ql = jax.block_until_ready(ql)
    ql_ref = dqn_reference(xl, params)
    assert ql.shape == (1000, OUT_FEATURES)
    assert jnp.allclose(ql, ql_ref, atol=1e-4, rtol=1e-4), "medium-batch q mismatch"
    assert jnp.array_equal(actl, jnp.argmax(ql, axis=1).astype(jnp.int32))

    # 3) Large batch exercising the 1-D "parallel" batch grid (lane-dense tiles).
    xg = jax.random.normal(k_xg, (4096, IN_FEATURES), dtype=jnp.float32)
    qg, actg = dqn_forward(xg, slab, offs, in_features=IN_FEATURES,
                           hidden=HIDDEN, out_features=OUT_FEATURES, tile_b=1024)
    qg = jax.block_until_ready(qg)
    qg_ref = dqn_reference(xg, params)
    assert qg.shape == (4096, OUT_FEATURES)
    assert jnp.allclose(qg, qg_ref, atol=1e-4, rtol=1e-4), "large-batch q mismatch"
    assert jnp.array_equal(actg, jnp.argmax(qg, axis=1).astype(jnp.int32))

    print("KERNEL_OK")
</pallas_src>

<mosaic_0001>
module attributes {stable_mosaic.version = 11 : i64} {
  func.func @kernel(%arg0: i32, %arg1: memref<8x2xf32, #tpu.memory_space<vmem>>, %arg2: memref<104x32xf32, #tpu.memory_space<vmem>>, %arg3: memref<4x2xf32, #tpu.memory_space<vmem>>, %arg4: memref<1x2xi32, #tpu.memory_space<vmem>>) attributes {dimension_semantics = [#tpu.dimension_semantics<parallel>], iteration_bounds = array<i64: 1>, scalar_prefetch = 0 : i64, scratch_operands = 0 : i64, tpu.core_type = #tpu.core_type<tc>, window_params = [{transform_indices = @transform_0, window_bounds = array<i64: 8, 2>}, {pipeline_mode = #tpu.pipeline_mode<synchronous>, transform_indices = @transform_1, window_bounds = array<i64: 104, 32>}, {transform_indices = @transform_2, window_bounds = array<i64: 4, 2>}, {transform_indices = @transform_3, window_bounds = array<i64: 1, 2>}]} {
    %c0 = arith.constant 0 : index
    %c0_0 = arith.constant 0 : index
    %0 = vector.load %arg1[%c0, %c0_0] : memref<8x2xf32, #tpu.memory_space<vmem>>, vector<8x2xf32>
    %c32 = arith.constant 32 : index
    %c0_1 = arith.constant 0 : index
    %1 = vector.load %arg2[%c32, %c0_1] : memref<104x32xf32, #tpu.memory_space<vmem>>, vector<32x8xf32>
    %c0_2 = arith.constant 0 : index
    %c0_3 = arith.constant 0 : index
    %2 = vector.load %arg2[%c0_2, %c0_3] : memref<104x32xf32, #tpu.memory_space<vmem>>, vector<32x1xf32>
    %cst = arith.constant dense<0.000000e+00> : vector<32x2xf32>
    %3 = tpu.matmul %1, %0, %cst {dimension_numbers = #tpu.dot_dimension_numbers<[1], [0], [0], [1], [0, 0, 1, 1], [], []>} : vector<32x8xf32>, vector<8x2xf32>, vector<32x2xf32> -> vector<32x2xf32>
    %4 = vector.broadcast %2 : vector<32x1xf32> to vector<32x2xf32>
    %5 = arith.addf %3, %4 : vector<32x2xf32>
    %6 = math.tanh %5 : vector<32x2xf32>
    %c64 = arith.constant 64 : index
    %c0_4 = arith.constant 0 : index
    %7 = vector.load %arg2[%c64, %c0_4] : memref<104x32xf32, #tpu.memory_space<vmem>>, vector<32x32xf32>
    %c0_5 = arith.constant 0 : index
    %c1 = arith.constant 1 : index
    %8 = vector.load %arg2[%c0_5, %c1] : memref<104x32xf32, #tpu.memory_space<vmem>>, vector<32x1xf32>
    %cst_6 = arith.constant dense<0.000000e+00> : vector<32x2xf32>
    %9 = tpu.matmul %7, %6, %cst_6 {dimension_numbers = #tpu.dot_dimension_numbers<[1], [0], [0], [1], [0, 0, 1, 1], [], []>} : vector<32x32xf32>, vector<32x2xf32>, vector<32x2xf32> -> vector<32x2xf32>
    %10 = vector.broadcast %8 : vector<32x1xf32> to vector<32x2xf32>
    %11 = arith.addf %9, %10 : vector<32x2xf32>
    %12 = math.tanh %11 : vector<32x2xf32>
    %c96 = arith.constant 96 : index
    %c0_7 = arith.constant 0 : index
    %13 = vector.load %arg2[%c96, %c0_7] : memref<104x32xf32, #tpu.memory_space<vmem>>, vector<4x32xf32>
    %c0_8 = arith.constant 0 : index
    %c2 = arith.constant 2 : index
    %14 = vector.load %arg2[%c0_8, %c2] : memref<104x32xf32, #tpu.memory_space<vmem>>, vector<4x1xf32>
    %cst_9 = arith.constant dense<0.000000e+00> : vector<4x2xf32>
    %15 = tpu.matmul %13, %12, %cst_9 {dimension_numbers = #tpu.dot_dimension_numbers<[1], [0], [0], [1], [0, 0, 1, 1], [], []>} : vector<4x32xf32>, vector<32x2xf32>, vector<4x2xf32> -> vector<4x2xf32>
    %16 = vector.broadcast %14 : vector<4x1xf32> to vector<4x2xf32>
    %17 = arith.addf %15, %16 : vector<4x2xf32>
    %c0_10 = arith.constant 0 : index
    %c0_11 = arith.constant 0 : index
    %18 = vector.load %arg3[%c0_10, %c0_11] : memref<4x2xf32, #tpu.memory_space<vmem>>, vector<4x2xf32>
    tpu.vector_store %arg3[%c0_10, %c0_11], %17 {strides = array<i32>} : memref<4x2xf32, #tpu.memory_space<vmem>>, vector<4x2xf32>,
    %19 = vector.extract_strided_slice %17 {offsets = [0, 0], sizes = [1, 2], strides = [1, 1]} : vector<4x2xf32> to vector<1x2xf32>
    %c0_i32 = arith.constant 0 : i32
    %20 = vector.broadcast %c0_i32 : i32 to vector<1x2xi32>
    %21 = vector.extract_strided_slice %17 {offsets = [1, 0], sizes = [1, 2], strides = [1, 1]} : vector<4x2xf32> to vector<1x2xf32>
    %22 = arith.cmpf ogt, %21, %19 : vector<1x2xf32>
    %23 = arith.select %22, %21, %19 : vector<1x2xi1>, vector<1x2xf32>
    %c1_i32 = arith.constant 1 : i32
    %24 = vector.broadcast %c1_i32 : i32 to vector<1x2xi32>
    %25 = arith.select %22, %24, %20 : vector<1x2xi1>, vector<1x2xi32>
    %26 = vector.extract_strided_slice %17 {offsets = [2, 0], sizes = [1, 2], strides = [1, 1]} : vector<4x2xf32> to vector<1x2xf32>
    %27 = arith.cmpf ogt, %26, %23 : vector<1x2xf32>
    %28 = arith.select %27, %26, %23 : vector<1x2xi1>, vector<1x2xf32>
    %c2_i32 = arith.constant 2 : i32
    %29 = vector.broadcast %c2_i32 : i32 to vector<1x2xi32>
    %30 = arith.select %27, %29, %25 : vector<1x2xi1>, vector<1x2xi32>
    %31 = vector.extract_strided_slice %17 {offsets = [3, 0], sizes = [1, 2], strides = [1, 1]} : vector<4x2xf32> to vector<1x2xf32>
    %32 = arith.cmpf ogt, %31, %28 : vector<1x2xf32>
    %c3_i32 = arith.constant 3 : i32
    %33 = vector.broadcast %c3_i32 : i32 to vector<1x2xi32>
    %34 = arith.select %32, %33, %30 : vector<1x2xi1>, vector<1x2xi32>
    %c0_12 = arith.constant 0 : index
    %c0_13 = arith.constant 0 : index
    %35 = vector.load %arg4[%c0_12, %c0_13] : memref<1x2xi32, #tpu.memory_space<vmem>>, vector<1x2xi32>
    tpu.vector_store %arg4[%c0_12, %c0_13], %34 {strides = array<i32>} : memref<1x2xi32, #tpu.memory_space<vmem>>, vector<1x2xi32>,
    return
  }
  func.func @transform_0(%arg0: i32) -> (i32, i32) {
    %c0_i32 = arith.constant 0 : i32
    %c0_i32_0 = arith.constant 0 : i32
    return %c0_i32, %arg0 : i32, i32
  }
  func.func @transform_1(%arg0: i32) -> (i32, i32) {
    %c0_i32 = arith.constant 0 : i32
    %c0_i32_0 = arith.constant 0 : i32
    %c0_i32_1 = arith.constant 0 : i32
    return %c0_i32, %c0_i32_0 : i32, i32
  }
  func.func @transform_2(%arg0: i32) -> (i32, i32) {
    %c0_i32 = arith.constant 0 : i32
    %c0_i32_0 = arith.constant 0 : i32
    return %c0_i32, %arg0 : i32, i32
  }
  func.func @transform_3(%arg0: i32) -> (i32, i32) {
    %c0_i32 = arith.constant 0 : i32
    %c0_i32_0 = arith.constant 0 : i32
    return %c0_i32, %arg0 : i32, i32
  }
}

</mosaic_0001>

<llo_original>
// kernel: tpu_custom_call.1
$region0: #{tpu_custom_call.1}
  #allocation0 [shape = 'u32[]', space=smem, size = 0x4, offset = 0x4, fixed_abs, tag = 'smem constant byte address 0x4 - core index']
  #allocation1 [shape = 'u32[144,128]{1,0:T(1,128)}', space=vmem, size = 0x12000, scoped, tag = 'internal scratch']
  %s0 = inlined_call_operand.vmem [shape: f32[8,2], index: 0, kind: input, shape index: {}]
  %s1 = inlined_call_operand.vmem [shape: f32[104,32], index: 1, kind: input, shape index: {}]
  %s2 = inlined_call_operand.vmem [shape: f32[4,2], index: 2, kind: output, shape index: {0}]
  %s3 = inlined_call_operand.hbm [shape: s32[1,2], index: 3, kind: output, shape index: {1}]
  %4 = xla_tuple %s2, %s3
  %s5 = sld [smem:[#allocation0]]
  $region26: #{tpu_custom_call.1} parent=0
    _
  %s7 = ssub.s32 1, %s5
  %s8 = scalar_select 0, %s7, %s5
  $region1: #{tpu_custom_call.1} parent=0
    #allocation2 [shape = 'u8[512]{0}', space=vmem, size = 0x400, scoped, tag = 'output window, operand 1, single buffered']
    #allocation3 [shape = 's32[1]{0}', space=sflag, size = 0x4, scoped, tag = 'scoped memory for tpu_custom_call.1']
    %9 = vsyncpa [#allocation3], 0
    // Predicated region
    $region2: #{tpu_custom_call.1} parent=1 // pred_check
      _
    $region3: #{tpu_custom_call.1} parent=1 // pred_check_branch
      %11 = sbr.rel (0) target = $region5
    $region4: #{tpu_custom_call.1} parent=1 // pred_region
      _
    $region5: #{tpu_custom_call.1} parent=1 // pred_fallthru
      _
    // Predicated region
    $region6: #{tpu_custom_call.1} parent=1 // pred_check
      _
    $region7: #{tpu_custom_call.1} parent=1 // pred_check_branch
      %13 = sbr.rel (0) target = $region9
    $region8: #{tpu_custom_call.1} parent=1 // pred_region
      _
    $region9: #{tpu_custom_call.1} parent=1 // pred_fallthru
      _
    %v14 = vld [vmem:[%s0] sm:$0xff]
    %v15 = vld [vmem:[%s1 + $0x20] sm:$0xff]
    %v16 = vld [vmem:[%s1 + $0x28] sm:$0xff]
    %v17 = vld [vmem:[%s1 + $0x30] sm:$0xff]
    %v18 = vld [vmem:[%s1 + $0x38] sm:$0xff]
    %v19 = vld [vmem:[%s1] sm:$0xff]
    %v20 = vld [vmem:[%s1 + $0x8] sm:$0xff]
    %v21 = vld [vmem:[%s1 + $0x10] sm:$0xff]
    %v22 = vld [vmem:[%s1 + $0x18] sm:$0xff]
    %24 = vset.pattern.permute.xlu0 0
    %25 = vperm.xlu0 %24, %v19
    %v26 = vpop.permute.xlu0 %25
    %29 = vset.pattern.permute.xlu0 0
    %30 = vperm.xlu0 %29, %v20
    %v31 = vpop.permute.xlu0 %30
    %34 = vset.pattern.permute.xlu0 0
    %35 = vperm.xlu0 %34, %v21
    %v36 = vpop.permute.xlu0 %35
    %39 = vset.pattern.permute.xlu0 0
    %40 = vperm.xlu0 %39, %v22
    %v41 = vpop.permute.xlu0 %40
    %vm43 = vcmask 64512
    %v45 = vsel %vm43, %v15, 0
    %v48 = vsel %vm43, %v16, 0
    %v51 = vsel %vm43, %v17, 0
    %v54 = vsel %vm43, %v18, 0
    %56 = vmatprep.subr.mxu0 0.0
    %57 = vmatpush1.msra.mxu0 0.0
    %58 = vmatprep.subr.mxu0 0.0
    %59 = vmatpush1.msra.mxu0 0.0
    %60 = vmatprep.subr.mxu0 0.0
    %61 = vmatpush1.msra.mxu0 0.0
    %62 = vmatprep.subr.mxu0 0.0
    %63 = vmatpush1.msra.mxu0 0.0
    %64 = vmatprep.subr.mxu0 0.0
    %65 = vmatpush1.msra.mxu0 0.0
    %66 = vmatprep.subr.mxu0 0.0
    %67 = vmatpush1.msra.mxu0 0.0
    %68 = vmatprep.subr.mxu0 0.0
    %69 = vmatpush1.msra.mxu0 0.0
    %70 = vmatprep.subr.mxu0 0.0
    %71 = vmatpush1.msra.mxu0 0.0
    %72 = vmatprep.subr.mxu0 0.0
    %73 = vmatpush1.msra.mxu0 0.0
    %74 = vmatprep.subr.mxu0 0.0
    %75 = vmatpush1.msra.mxu0 0.0
    %76 = vmatprep.subr.mxu0 0.0
    %77 = vmatpush1.msra.mxu0 0.0
    %78 = vmatprep.subr.mxu0 0.0
    %79 = vmatpush1.msra.mxu0 0.0
    %80 = vmatprep.subr.mxu0 0.0
    %81 = vmatpush1.msra.mxu0 0.0
    %82 = vmatprep.subr.mxu0 0.0
    %83 = vmatpush1.msra.mxu0 0.0
    %84 = vmatprep.subr.mxu0 0.0
    %85 = vmatpush1.msra.mxu0 0.0
    %86 = vmatprep.subr.mxu0 0.0
    %87 = vmatpush1.msra.mxu0 %v14
    %88 = vmatprep.subr.mxu0 0.0
    %89 = vmatpush2.msra.mxu0 0.0
    %90 = vmatprep.subr.mxu0 0.0
    %91 = vmatpush2.msra.mxu0 0.0
    %92 = vmatprep.subr.mxu0 0.0
    %93 = vmatpush2.msra.mxu0 0.0
    %94 = vmatprep.subr.mxu0 0.0
    %95 = vmatpush2.msra.mxu0 0.0
    %96 = vmatprep.subr.mxu0 0.0
    %97 = vmatpush2.msra.mxu0 0.0
    %98 = vmatprep.subr.mxu0 0.0
    %99 = vmatpush2.msra.mxu0 0.0
    %100 = vmatprep.subr.mxu0 0.0
    %101 = vmatpush2.msra.mxu0 0.0
    %102 = vmatprep.subr.mxu0 0.0
    %103 = vmatpush2.msra.mxu0 0.0
    %104 = vmatprep.subr.mxu0 0.0
    %105 = vmatpush2.msra.mxu0 0.0
    %106 = vmatprep.subr.mxu0 0.0
    %107 = vmatpush2.msra.mxu0 0.0
    %108 = vmatprep.subr.mxu0 0.0
    %109 = vmatpush2.msra.mxu0 0.0
    %110 = vmatprep.subr.mxu0 0.0
    %111 = vmatpush2.msra.mxu0 0.0
    %112 = vmatprep.subr.mxu0 0.0
    %113 = vmatpush2.msra.mxu0 0.0
    %114 = vmatprep.subr.mxu0 0.0
    %115 = vmatpush2.msra.mxu0 0.0
    %116 = vmatprep.subr.mxu0 0.0
    %117 = vmatpush2.msra.mxu0 0.0
    %118 = vmatprep.subr.mxu0 0.0
    %119 = vmatpush2.msra.mxu0 0.0
    %120 = vmatprep.mubr.f32.mxu0 0.0
    %121 = vmatmul.mubr.f32.gmra.mxu0 %v45
    %v122 = vpop.f32.mrf.mxu0
    %v123 = vadd.f32 %v26, %v122
    %v124 = vpop.f32.mrf.mxu0
    %125 = vmatprep.mubr.f32.mxu0 0.0
    %126 = vmatmul.mubr.f32.gmra.mxu0 %v48
    %v127 = vpop.f32.mrf.mxu0
    %v128 = vadd.f32 %v31, %v127
    %v129 = vpop.f32.mrf.mxu0
    %130 = vmatprep.mubr.f32.mxu0 0.0
    %131 = vmatmul.mubr.f32.gmra.mxu0 %v51
    %v132 = vpop.f32.mrf.mxu0
    %v133 = vadd.f32 %v36, %v132
    %v134 = vpop.f32.mrf.mxu0
    %135 = vmatprep.mubr.f32.mxu0 0.0
    %136 = vmatmul.mubr.f32.gmra.mxu0 %v54
    %v137 = vpop.f32.mrf.mxu0
    %v138 = vadd.f32 %v41, %v137
    %v139 = vpop.f32.mrf.mxu0
    %140 = vdwg.mxu0
    %v141 = vtanh.pop %v123
    %v142 = vtanh.pop %v128
    %v143 = vtanh.pop %v133
    %v144 = vtanh.pop %v138
    %v145 = vld [vmem:[%s1 + $0x40] sm:$0xff]
    %v146 = vld [vmem:[%s1 + $0x48] sm:$0xff]
    %v147 = vld [vmem:[%s1 + $0x50] sm:$0xff]
    %v148 = vld [vmem:[%s1 + $0x58] sm:$0xff]
    %149 = vset.pattern.permute.xlu0 1
    %150 = vperm.xlu0 %149, %v19
    %v151 = vpop.permute.xlu0 %150
    %153 = vset.pattern.permute.xlu0 1
    %154 = vperm.xlu0 %153, %v20
    %v155 = vpop.permute.xlu0 %154
    %157 = vset.pattern.permute.xlu0 1
    %158 = vperm.xlu0 %157, %v21
    %v159 = vpop.permute.xlu0 %158
    %161 = vset.pattern.permute.xlu0 1
    %162 = vperm.xlu0 %161, %v22
    %v163 = vpop.permute.xlu0 %162
    %vm165 = vcmask 261120
    %v167 = vsel %vm165, %v145, 0
    %v170 = vsel %vm165, %v146, 0
    %v173 = vsel %vm165, %v147, 0
    %v176 = vsel %vm165, %v148, 0
    %178 = vmatprep.subr.mxu0 0.0
    %179 = vmatpush1.msra.mxu0 0.0
    %180 = vmatprep.subr.mxu0 0.0
    %181 = vmatpush1.msra.mxu0 0.0
    %182 = vmatprep.subr.mxu0 0.0
    %183 = vmatpush1.msra.mxu0 0.0
    %184 = vmatprep.subr.mxu0 0.0
    %185 = vmatpush1.msra.mxu0 0.0
    %186 = vmatprep.subr.mxu0 0.0
    %187 = vmatpush1.msra.mxu0 0.0
    %188 = vmatprep.subr.mxu0 0.0
    %189 = vmatpush1.msra.mxu0 0.0
    %190 = vmatprep.subr.mxu0 0.0
    %191 = vmatpush1.msra.mxu0 0.0
    %192 = vmatprep.subr.mxu0 0.0
    %193 = vmatpush1.msra.mxu0 0.0
    %194 = vmatprep.subr.mxu0 0.0
    %195 = vmatpush1.msra.mxu0 0.0
    %196 = vmatprep.subr.mxu0 0.0
    %197 = vmatpush1.msra.mxu0 0.0
    %198 = vmatprep.subr.mxu0 0.0
    %199 = vmatpush1.msra.mxu0 0.0
    %200 = vmatprep.subr.mxu0 0.0
    %201 = vmatpush1.msra.mxu0 0.0
    %202 = vmatprep.subr.mxu0 0.0
    %203 = vmatpush1.msra.mxu0 %v144
    %204 = vmatprep.subr.mxu0 0.0
    %205 = vmatpush1.msra.mxu0 %v143
    %206 = vmatprep.subr.mxu0 0.0
    %207 = vmatpush1.msra.mxu0 %v142
    %208 = vmatprep.subr.mxu0 0.0
    %209 = vmatpush1.msra.mxu0 %v141
    %210 = vmatprep.subr.mxu0 0.0
    %211 = vmatpush2.msra.mxu0 0.0
    %212 = vmatprep.subr.mxu0 0.0
    %213 = vmatpush2.msra.mxu0 0.0
    %214 = vmatprep.subr.mxu0 0.0
    %215 = vmatpush2.msra.mxu0 0.0
    %216 = vmatprep.subr.mxu0 0.0
    %217 = vmatpush2.msra.mxu0 0.0
    %218 = vmatprep.subr.mxu0 0.0
    %219 = vmatpush2.msra.mxu0 0.0
    %220 = vmatprep.subr.mxu0 0.0
    %221 = vmatpush2.msra.mxu0 0.0
    %222 = vmatprep.subr.mxu0 0.0
    %223 = vmatpush2.msra.mxu0 0.0
    %224 = vmatprep.subr.mxu0 0.0
    %225 = vmatpush2.msra.mxu0 0.0
    %226 = vmatprep.subr.mxu0 0.0
    %227 = vmatpush2.msra.mxu0 0.0
    %228 = vmatprep.subr.mxu0 0.0
    %229 = vmatpush2.msra.mxu0 0.0
    %230 = vmatprep.subr.mxu0 0.0
    %231 = vmatpush2.msra.mxu0 0.0
    %232 = vmatprep.subr.mxu0 0.0
    %233 = vmatpush2.msra.mxu0 0.0
    %234 = vmatprep.subr.mxu0 0.0
    %235 = vmatpush2.msra.mxu0 0.0
    %236 = vmatprep.subr.mxu0 0.0
    %237 = vmatpush2.msra.mxu0 0.0
    %238 = vmatprep.subr.mxu0 0.0
    %239 = vmatpush2.msra.mxu0 0.0
    %240 = vmatprep.subr.mxu0 0.0
    %241 = vmatpush2.msra.mxu0 0.0
    %242 = vmatprep.mubr.f32.mxu0 0.0
    %243 = vmatmul.mubr.f32.gmra.mxu0 %v167
    %v244 = vpop.f32.mrf.mxu0
    %v245 = vadd.f32 %v151, %v244
    %v246 = vpop.f32.mrf.mxu0
    %247 = vmatprep.mubr.f32.mxu0 0.0
    %248 = vmatmul.mubr.f32.gmra.mxu0 %v170
    %v249 = vpop.f32.mrf.mxu0
    %v250 = vadd.f32 %v155, %v249
    %v251 = vpop.f32.mrf.mxu0
    %252 = vmatprep.mubr.f32.mxu0 0.0
    %253 = vmatmul.mubr.f32.gmra.mxu0 %v173
    %v254 = vpop.f32.mrf.mxu0
    %v255 = vadd.f32 %v159, %v254
    %v256 = vpop.f32.mrf.mxu0
    %257 = vmatprep.mubr.f32.mxu0 0.0
    %258 = vmatmul.mubr.f32.gmra.mxu0 %v176
    %v259 = vpop.f32.mrf.mxu0
    %v260 = vadd.f32 %v163, %v259
    %v261 = vpop.f32.mrf.mxu0
    %262 = vdwg.mxu0
    %v263 = vtanh.pop %v245
    %v264 = vtanh.pop %v250
    %v265 = vtanh.pop %v255
    %v266 = vtanh.pop %v260
    %v267 = vld [vmem:[%s1 + $0x60] sm:$0xf]
    %v268 = vld [vmem:[%s1] sm:$0xf]
    %270 = vset.pattern.permute.xlu0 2
    %271 = vperm.xlu0 %270, %v268
    %v272 = vpop.permute.xlu0 %271
    %v275 = vsel %vm165, %v267, 0
    %277 = vmatprep.subr.mxu0 0.0
    %278 = vmatpush1.msra.mxu0 0.0
    %279 = vmatprep.subr.mxu0 0.0
    %280 = vmatpush1.msra.mxu0 0.0
    %281 = vmatprep.subr.mxu0 0.0
    %282 = vmatpush1.msra.mxu0 0.0
    %283 = vmatprep.subr.mxu0 0.0
    %284 = vmatpush1.msra.mxu0 0.0
    %285 = vmatprep.subr.mxu0 0.0
    %286 = vmatpush1.msra.mxu0 0.0
    %287 = vmatprep.subr.mxu0 0.0
    %288 = vmatpush1.msra.mxu0 0.0
    %289 = vmatprep.subr.mxu0 0.0
    %290 = vmatpush1.msra.mxu0 0.0
    %291 = vmatprep.subr.mxu0 0.0
    %292 = vmatpush1.msra.mxu0 0.0
    %293 = vmatprep.subr.mxu0 0.0
    %294 = vmatpush1.msra.mxu0 0.0
    %295 = vmatprep.subr.mxu0 0.0
    %296 = vmatpush1.msra.mxu0 0.0
    %297 = vmatprep.subr.mxu0 0.0
    %298 = vmatpush1.msra.mxu0 0.0
    %299 = vmatprep.subr.mxu0 0.0
    %300 = vmatpush1.msra.mxu0 0.0
    %301 = vmatprep.subr.mxu0 0.0
    %302 = vmatpush1.msra.mxu0 %v266
    %303 = vmatprep.subr.mxu0 0.0
    %304 = vmatpush1.msra.mxu0 %v265
    %305 = vmatprep.subr.mxu0 0.0
    %306 = vmatpush1.msra.mxu0 %v264
    %307 = vmatprep.subr.mxu0 0.0
    %308 = vmatpush1.msra.mxu0 %v263
    %309 = vmatprep.subr.mxu0 0.0
    %310 = vmatpush2.msra.mxu0 0.0
    %311 = vmatprep.subr.mxu0 0.0
    %312 = vmatpush2.msra.mxu0 0.0
    %313 = vmatprep.subr.mxu0 0.0
    %314 = vmatpush2.msra.mxu0 0.0
    %315 = vmatprep.subr.mxu0 0.0
    %316 = vmatpush2.msra.mxu0 0.0
    %317 = vmatprep.subr.mxu0 0.0
    %318 = vmatpush2.msra.mxu0 0.0
    %319 = vmatprep.subr.mxu0 0.0
    %320 = vmatpush2.msra.mxu0 0.0
    %321 = vmatprep.subr.mxu0 0.0
    %322 = vmatpush2.msra.mxu0 0.0
    %323 = vmatprep.subr.mxu0 0.0
    %324 = vmatpush2.msra.mxu0 0.0
    %325 = vmatprep.subr.mxu0 0.0
    %326 = vmatpush2.msra.mxu0 0.0
    %327 = vmatprep.subr.mxu0 0.0
    %328 = vmatpush2.msra.mxu0 0.0
    %329 = vmatprep.subr.mxu0 0.0
    %330 = vmatpush2.msra.mxu0 0.0
    %331 = vmatprep.subr.mxu0 0.0
    %332 = vmatpush2.msra.mxu0 0.0
    %333 = vmatprep.subr.mxu0 0.0
    %334 = vmatpush2.msra.mxu0 0.0
    %335 = vmatprep.subr.mxu0 0.0
    %336 = vmatpush2.msra.mxu0 0.0
    %337 = vmatprep.subr.mxu0 0.0
    %338 = vmatpush2.msra.mxu0 0.0
    %339 = vmatprep.subr.mxu0 0.0
    %340 = vmatpush2.msra.mxu0 0.0
    %341 = vmatprep.mubr.f32.mxu0 0.0
    %342 = vmatmul.mubr.f32.gmra.mxu0 %v275
    %v343 = vpop.f32.mrf.mxu0
    %v344 = vadd.f32 %v272, %v343
    %v345 = vpop.f32.mrf.mxu0
    %346 = vdwg.mxu0
    %vm347 = vcmask 11264
    %348 = vst.msk [vmem:[%s2] sm:$0xf] %vm347, %v344
    %v350 = vrot.slane %v344, 7
    %vm352 = vcmp.gt.f32.partialorder %v344, %v350
    %v353 = vsel %vm352, %v344, %v350
    %v354 = vsel %vm352, 1, 0
    %v356 = vrot.slane %v353, 7
    %vm358 = vcmp.gt.f32.partialorder %v344, %v356
    %v359 = vsel %vm358, %v344, %v356
    %v360 = vrot.slane %v354, 7
    %v361 = vsel %vm358, 2, %v360
    %v363 = vrot.slane %v359, 7
    %vm365 = vcmp.gt.f32.partialorder %v344, %v363
    %v366 = vrot.slane %v361, 7
    %v367 = vsel %vm365, 3, %v366
    %vm368 = vcmask 11267
    %369 = vst.msk [vmem:[#allocation2 - $0x3] sm:$0x8] %vm368, %v367
    // Predicated region
    $region10: #{tpu_custom_call.1} parent=1 // pred_check
      _
    $region11: #{tpu_custom_call.1} parent=1 // pred_check_branch
      %371 = sbr.rel (0) target = $region13
    $region12: #{tpu_custom_call.1} parent=1 // pred_region
      _
    $region13: #{tpu_custom_call.1} parent=1 // pred_fallthru
      _
    // Predicated region
    $region14: #{tpu_custom_call.1} parent=1 // pred_check
      _
    $region15: #{tpu_custom_call.1} parent=1 // pred_check_branch
      %373 = sbr.rel (0) target = $region17
    $region16: #{tpu_custom_call.1} parent=1 // pred_region
      %s375 = ssub.s32 16, 16
      %376 = vsyncadd [#allocation3], %s375
      %s378 = sshll.u32 [#allocation2], 4
      %s379 = int_to_ptr.vmem [resolvable:$true] %s378
      %381 = dma.vmem_to_hbm [thread:$0]  %s379, 16, %s3, [#allocation3]
    $region17: #{tpu_custom_call.1} parent=1 // pred_fallthru
      _
    // Predicated region
    $region18: #{tpu_custom_call.1} parent=1 // pred_check
      _
    $region19: #{tpu_custom_call.1} parent=1 // pred_check_branch
      %383 = sbr.rel (0) target = $region21
    $region20: #{tpu_custom_call.1} parent=1 // pred_region
      _
    $region21: #{tpu_custom_call.1} parent=1 // pred_fallthru
      _
    // Predicated region
    $region22: #{tpu_custom_call.1} parent=1 // pred_check
      _
    $region23: #{tpu_custom_call.1} parent=1 // pred_check_branch
      %385 = sbr.rel (0) target = $region25
    $region24: #{tpu_custom_call.1} parent=1 // pred_region
      %386 = dma.done [#allocation3], 16
    $region25: #{tpu_custom_call.1} parent=1 // pred_fallthru
      _
    %387 = vsyncpa [#allocation3], 1

</llo_original>
